<compile_context>
chip_gen: v7x
topology: tpu7x:2x2x1
jax: 0.10.0
libtpu: 0.0.40
codegen_flags: <defaults>
</compile_context>

<pallas_src>
import jax
import jax.numpy as jnp
from jax.experimental import pallas as pl
from jax.experimental.pallas import tpu as pltpu


def _round_up(v, m):
    return ((v + m - 1) // m) * m


def _outconv_fma_kernel(x_ref, w_ref, b_ref, o_ref):
    """VPU broadcast-FMA path for tiny weight matrices.

    x_ref: (C_in, TILE_S) VMEM      w_ref: (C_out, C_in) f32 SMEM
    b_ref: (C_out,)      f32 SMEM   o_ref: (C_out, TILE_S) VMEM
    """
    x = x_ref[...].astype(jnp.float32)          # (C_in, T)
    c_out, c_in = w_ref.shape
    rows = []
    for o in range(c_out):                      # fully unrolled at trace time
        acc = w_ref[o, 0] * x[0:1, :]           # (1, T)
        for c in range(1, c_in):
            acc = acc + w_ref[o, c] * x[c:c + 1, :]
        rows.append(acc + b_ref[o])
    o_ref[...] = jnp.concatenate(rows, axis=0).astype(o_ref.dtype)


def _outconv_dot_kernel(x_ref, w_ref, b_ref, o_ref):
    """MXU dot path for larger channel counts.

    x_ref: (C_in, TILE_S) VMEM   w_ref: (C_out, C_in) VMEM
    b_ref: (C_out, 1) f32 VMEM   o_ref: (C_out, TILE_S) VMEM
    """
    acc = jnp.dot(w_ref[...], x_ref[...], preferred_element_type=jnp.float32)
    o_ref[...] = (acc + b_ref[...]).astype(o_ref.dtype)


def _choose_tile(S, N, tile_cap):
    """Lane-aligned (multiple of 128) spatial tile.

    * Whole-S per batch when it fits under `tile_cap` (fewest grid steps, longest
      DMA bursts -- ideal on single-TC v5e/v6e).
    * If that would leave a single total grid step (N == 1), split into two
      spatial tiles so both v7x TensorCores get work.
    * Otherwise cap at `tile_cap` lanes (~8 MiB double-buffered at f32, well under
      v7x's 32 MiB scoped VMEM; trivial on v5e/v6e's 128 MiB).
    """
    s128 = _round_up(S, 128)
    if s128 <= tile_cap:
        if N >= 2 or s128 <= 128:
            return s128
        return max(128, _round_up(_round_up(S, 2) // 2, 128))
    return tile_cap


def outconv_forward(x_nchw, weight, bias, *, tile_cap=65536, fma_weight_limit=64):
    """1x1 conv with bias; semantics of nn.Conv2d(in_ch, out_ch, 1).

    x_nchw : [N, C_in, H, W]   (f32 or bf16 -- kept as-is, no extra cast pass)
    weight : [C_out, C_in, 1, 1]  (PyTorch conv weight layout)
    bias   : [C_out]
    returns: [N, C_out, H, W] in x's dtype.
    """
    N, C_in, H, W = x_nchw.shape
    C_out = weight.shape[0]
    S = H * W

    # Free reshapes only: per batch the input is viewed as (C_in, H*W) with the
    # flattened spatial axis on lanes. No pad, no slice, no transposes.
    x3 = x_nchw.reshape(N, C_in, S)
    w2d = weight.reshape(C_out, C_in)

    tile = _choose_tile(S, N, tile_cap)
    grid = (N, pl.cdiv(S, tile))

    itemsize = jnp.dtype(x3.dtype).itemsize
    p_itemsize = jnp.dtype(weight.dtype).itemsize
    cost = pl.CostEstimate(
        flops=2 * N * S * C_in * C_out,
        transcendentals=0,
        bytes_accessed=(N * C_in * S + N * C_out * S) * itemsize
        + (C_in * C_out + C_out) * p_itemsize,
    )

    x_spec = pl.BlockSpec((None, C_in, tile), lambda n, s: (n, 0, s))
    out_spec = pl.BlockSpec((None, C_out, tile), lambda n, s: (n, 0, s))

    if C_out * C_in <= fma_weight_limit:
        # Tiny weight matrix (e.g. 5x4): a K=4, M=5 MXU dot wastes >99% of the
        # array and can hit the v7x critical path. Hold the weights/bias as SMEM
        # scalars and do the conv as an unrolled VPU broadcast-FMA instead.
        kernel = _outconv_fma_kernel
        w_arg = w2d.astype(jnp.float32)
        b_arg = bias.astype(jnp.float32)
        w_spec = pl.BlockSpec(memory_space=pltpu.MemorySpace.SMEM)
        b_spec = pl.BlockSpec(memory_space=pltpu.MemorySpace.SMEM)
    else:
        # Real module shape (64 -> n_class*n_height): MXU dot, f32 accumulation.
        kernel = _outconv_dot_kernel
        w_arg = w2d
        b_arg = bias.reshape(C_out, 1).astype(jnp.float32)
        w_spec = pl.BlockSpec((C_out, C_in), lambda n, s: (0, 0))
        b_spec = pl.BlockSpec((C_out, 1), lambda n, s: (0, 0))

    out3 = pl.pallas_call(
        kernel,
        out_shape=jax.ShapeDtypeStruct((N, C_out, S), x3.dtype),
        grid_spec=pltpu.PrefetchScalarGridSpec(
            num_scalar_prefetch=0,
            grid=grid,
            in_specs=[x_spec, w_spec, b_spec],
            out_specs=out_spec,
        ),
        compiler_params=pltpu.CompilerParams(
            dimension_semantics=("parallel", "parallel"),
        ),
        cost_estimate=cost,
    )(x3, w_arg, b_arg)

    return out3.reshape(N, C_out, H, W)       # free reshape back to NCHW


def bev_unet_head_forward(x_nchw, weight, bias, *, n_class, n_height, **kw):
    """outconv + BEV_Unet's trailing permute/view/permute.

    x_nchw : [N, C_in, H, W] feature map entering `outc`
    returns: [N, n_class, H, W, n_height]
    """
    y = outconv_forward(x_nchw, weight, bias, **kw)   # (N, n_class*n_height, H, W)
    N, _, H, W = y.shape
    y = jnp.transpose(y, (0, 2, 3, 1))                # (N, H, W, C)
    y = y.reshape(N, H, W, n_height, n_class)
    return jnp.transpose(y, (0, 4, 1, 2, 3))          # (N, n_class, H, W, n_height)


def _ref_outconv(x, weight, bias):
    c_out, c_in = weight.shape[0], weight.shape[1]
    return (jnp.einsum("nchw,oc->nohw", x, weight.reshape(c_out, c_in))
            + bias.reshape(1, c_out, 1, 1))


if __name__ == "__main__":
    key = jax.random.PRNGKey(0)

    # --- Test 1: tiny-channel VPU-FMA path (C_in=4 -> C_out=5), even grid ----
    k1, k2, k3, key = jax.random.split(key, 4)
    N, C_in, H, W = 2, 4, 16, 16
    C_out = 5
    x = jax.random.normal(k1, (N, C_in, H, W), dtype=jnp.float32)
    w = jax.random.normal(k2, (C_out, C_in, 1, 1), dtype=jnp.float32) * 0.1
    b = jax.random.normal(k3, (C_out,), dtype=jnp.float32) * 0.1
    y = jax.block_until_ready(outconv_forward(x, w, b))
    assert y.shape == (N, C_out, H, W)
    assert jnp.allclose(y, _ref_outconv(x, w, b), atol=1e-5, rtol=1e-5)

    # --- Test 2: N=1 with ragged spatial extent (masked edge block, 2 tiles) -
    k1, k2, k3, key = jax.random.split(key, 4)
    N, C_in, H, W = 1, 4, 16, 19          # S = 304 -> tile 256 -> ragged tail
    C_out = 5
    x = jax.random.normal(k1, (N, C_in, H, W), dtype=jnp.float32)
    w = jax.random.normal(k2, (C_out, C_in, 1, 1), dtype=jnp.float32) * 0.1
    b = jax.random.normal(k3, (C_out,), dtype=jnp.float32) * 0.1
    y = jax.block_until_ready(outconv_forward(x, w, b))
    assert y.shape == (N, C_out, H, W)
    assert jnp.allclose(y, _ref_outconv(x, w, b), atol=1e-5, rtol=1e-5)

    # --- Test 3: faithful outc shape (64 -> n_class*n_height) + BEV reshape --
    k1, k2, k3, key = jax.random.split(key, 4)
    n_class, n_height = 5, 4
    N, C_in, H, W = 2, 64, 16, 16
    C_out = n_class * n_height
    x = jax.random.normal(k1, (N, C_in, H, W), dtype=jnp.float32)
    w = jax.random.normal(k2, (C_out, C_in, 1, 1), dtype=jnp.float32) * 0.05
    b = jax.random.normal(k3, (C_out,), dtype=jnp.float32) * 0.05
    y = jax.block_until_ready(
        bev_unet_head_forward(x, w, b, n_class=n_class, n_height=n_height))
    ref = _ref_outconv(x, w, b)
    ref = jnp.transpose(ref, (0, 2, 3, 1)).reshape(N, H, W, n_height, n_class)
    ref = jnp.transpose(ref, (0, 4, 1, 2, 3))
    assert y.shape == (N, n_class, H, W, n_height)
    assert jnp.allclose(y, ref, atol=1e-4, rtol=1e-4)

    print("KERNEL_OK")
</pallas_src>

<mosaic_0001>
module attributes {stable_mosaic.version = 11 : i64} {
  func.func @_outconv_fma_kernel(%arg0: i32, %arg1: i32, %arg2: memref<1x4x256xf32, #tpu.memory_space<vmem>>, %arg3: memref<5x4xf32, #tpu.memory_space<smem>>, %arg4: memref<5xf32, #tpu.memory_space<smem>>, %arg5: memref<1x5x256xf32, #tpu.memory_space<vmem>>) attributes {dimension_semantics = [#tpu.dimension_semantics<parallel>, #tpu.dimension_semantics<parallel>], iteration_bounds = array<i64: 2, 1>, scalar_prefetch = 0 : i64, scratch_operands = 0 : i64, tpu.core_type = #tpu.core_type<tc>, window_params = [{transform_indices = @transform_0, window_bounds = array<i64: 1, 4, 256>}, {transform_indices = @transform_1, window_bounds = array<i64: 5, 4>}, {transform_indices = @transform_2, window_bounds = array<i64: 5>}, {transform_indices = @transform_3, window_bounds = array<i64: 1, 5, 256>}]} {
    %c0 = arith.constant 0 : index
    %c0_0 = arith.constant 0 : index
    %c0_1 = arith.constant 0 : index
    %0 = vector.load %arg2[%c0, %c0_0, %c0_1] : memref<1x4x256xf32, #tpu.memory_space<vmem>>, vector<1x4x256xf32>
    %1 = vector.shape_cast %0 : vector<1x4x256xf32> to vector<4x256xf32>
    %c0_2 = arith.constant 0 : index
    %c0_3 = arith.constant 0 : index
    %2 = memref.load %arg3[%c0_2, %c0_3] : memref<5x4xf32, #tpu.memory_space<smem>>
    %3 = vector.extract_strided_slice %1 {offsets = [0, 0], sizes = [1, 256], strides = [1, 1]} : vector<4x256xf32> to vector<1x256xf32>
    %4 = vector.broadcast %2 : f32 to vector<1x256xf32>
    %5 = arith.mulf %4, %3 : vector<1x256xf32>
    %c0_4 = arith.constant 0 : index
    %c1 = arith.constant 1 : index
    %6 = memref.load %arg3[%c0_4, %c1] : memref<5x4xf32, #tpu.memory_space<smem>>
    %7 = vector.extract_strided_slice %1 {offsets = [1, 0], sizes = [1, 256], strides = [1, 1]} : vector<4x256xf32> to vector<1x256xf32>
    %8 = vector.broadcast %6 : f32 to vector<1x256xf32>
    %9 = arith.mulf %8, %7 : vector<1x256xf32>
    %10 = arith.addf %5, %9 : vector<1x256xf32>
    %c0_5 = arith.constant 0 : index
    %c2 = arith.constant 2 : index
    %11 = memref.load %arg3[%c0_5, %c2] : memref<5x4xf32, #tpu.memory_space<smem>>
    %12 = vector.extract_strided_slice %1 {offsets = [2, 0], sizes = [1, 256], strides = [1, 1]} : vector<4x256xf32> to vector<1x256xf32>
    %13 = vector.broadcast %11 : f32 to vector<1x256xf32>
    %14 = arith.mulf %13, %12 : vector<1x256xf32>
    %15 = arith.addf %10, %14 : vector<1x256xf32>
    %c0_6 = arith.constant 0 : index
    %c3 = arith.constant 3 : index
    %16 = memref.load %arg3[%c0_6, %c3] : memref<5x4xf32, #tpu.memory_space<smem>>
    %17 = vector.extract_strided_slice %1 {offsets = [3, 0], sizes = [1, 256], strides = [1, 1]} : vector<4x256xf32> to vector<1x256xf32>
    %18 = vector.broadcast %16 : f32 to vector<1x256xf32>
    %19 = arith.mulf %18, %17 : vector<1x256xf32>
    %20 = arith.addf %15, %19 : vector<1x256xf32>
    %c0_7 = arith.constant 0 : index
    %21 = memref.load %arg4[%c0_7] : memref<5xf32, #tpu.memory_space<smem>>
    %22 = vector.broadcast %21 : f32 to vector<1x256xf32>
    %23 = arith.addf %20, %22 : vector<1x256xf32>
    %c1_8 = arith.constant 1 : index
    %c0_9 = arith.constant 0 : index
    %24 = memref.load %arg3[%c1_8, %c0_9] : memref<5x4xf32, #tpu.memory_space<smem>>
    %25 = vector.extract_strided_slice %1 {offsets = [0, 0], sizes = [1, 256], strides = [1, 1]} : vector<4x256xf32> to vector<1x256xf32>
    %26 = vector.broadcast %24 : f32 to vector<1x256xf32>
    %27 = arith.mulf %26, %25 : vector<1x256xf32>
    %c1_10 = arith.constant 1 : index
    %c1_11 = arith.constant 1 : index
    %28 = memref.load %arg3[%c1_10, %c1_11] : memref<5x4xf32, #tpu.memory_space<smem>>
    %29 = vector.extract_strided_slice %1 {offsets = [1, 0], sizes = [1, 256], strides = [1, 1]} : vector<4x256xf32> to vector<1x256xf32>
    %30 = vector.broadcast %28 : f32 to vector<1x256xf32>
    %31 = arith.mulf %30, %29 : vector<1x256xf32>
    %32 = arith.addf %27, %31 : vector<1x256xf32>
    %c1_12 = arith.constant 1 : index
    %c2_13 = arith.constant 2 : index
    %33 = memref.load %arg3[%c1_12, %c2_13] : memref<5x4xf32, #tpu.memory_space<smem>>
    %34 = vector.extract_strided_slice %1 {offsets = [2, 0], sizes = [1, 256], strides = [1, 1]} : vector<4x256xf32> to vector<1x256xf32>
    %35 = vector.broadcast %33 : f32 to vector<1x256xf32>
    %36 = arith.mulf %35, %34 : vector<1x256xf32>
    %37 = arith.addf %32, %36 : vector<1x256xf32>
    %c1_14 = arith.constant 1 : index
    %c3_15 = arith.constant 3 : index
    %38 = memref.load %arg3[%c1_14, %c3_15] : memref<5x4xf32, #tpu.memory_space<smem>>
    %39 = vector.extract_strided_slice %1 {offsets = [3, 0], sizes = [1, 256], strides = [1, 1]} : vector<4x256xf32> to vector<1x256xf32>
    %40 = vector.broadcast %38 : f32 to vector<1x256xf32>
    %41 = arith.mulf %40, %39 : vector<1x256xf32>
    %42 = arith.addf %37, %41 : vector<1x256xf32>
    %c1_16 = arith.constant 1 : index
    %43 = memref.load %arg4[%c1_16] : memref<5xf32, #tpu.memory_space<smem>>
    %44 = vector.broadcast %43 : f32 to vector<1x256xf32>
    %45 = arith.addf %42, %44 : vector<1x256xf32>
    %c2_17 = arith.constant 2 : index
    %c0_18 = arith.constant 0 : index
    %46 = memref.load %arg3[%c2_17, %c0_18] : memref<5x4xf32, #tpu.memory_space<smem>>
    %47 = vector.extract_strided_slice %1 {offsets = [0, 0], sizes = [1, 256], strides = [1, 1]} : vector<4x256xf32> to vector<1x256xf32>
    %48 = vector.broadcast %46 : f32 to vector<1x256xf32>
    %49 = arith.mulf %48, %47 : vector<1x256xf32>
    %c2_19 = arith.constant 2 : index
    %c1_20 = arith.constant 1 : index
    %50 = memref.load %arg3[%c2_19, %c1_20] : memref<5x4xf32, #tpu.memory_space<smem>>
    %51 = vector.extract_strided_slice %1 {offsets = [1, 0], sizes = [1, 256], strides = [1, 1]} : vector<4x256xf32> to vector<1x256xf32>
    %52 = vector.broadcast %50 : f32 to vector<1x256xf32>
    %53 = arith.mulf %52, %51 : vector<1x256xf32>
    %54 = arith.addf %49, %53 : vector<1x256xf32>
    %c2_21 = arith.constant 2 : index
    %c2_22 = arith.constant 2 : index
    %55 = memref.load %arg3[%c2_21, %c2_22] : memref<5x4xf32, #tpu.memory_space<smem>>
    %56 = vector.extract_strided_slice %1 {offsets = [2, 0], sizes = [1, 256], strides = [1, 1]} : vector<4x256xf32> to vector<1x256xf32>
    %57 = vector.broadcast %55 : f32 to vector<1x256xf32>
    %58 = arith.mulf %57, %56 : vector<1x256xf32>
    %59 = arith.addf %54, %58 : vector<1x256xf32>
    %c2_23 = arith.constant 2 : index
    %c3_24 = arith.constant 3 : index
    %60 = memref.load %arg3[%c2_23, %c3_24] : memref<5x4xf32, #tpu.memory_space<smem>>
    %61 = vector.extract_strided_slice %1 {offsets = [3, 0], sizes = [1, 256], strides = [1, 1]} : vector<4x256xf32> to vector<1x256xf32>
    %62 = vector.broadcast %60 : f32 to vector<1x256xf32>
    %63 = arith.mulf %62, %61 : vector<1x256xf32>
    %64 = arith.addf %59, %63 : vector<1x256xf32>
    %c2_25 = arith.constant 2 : index
    %65 = memref.load %arg4[%c2_25] : memref<5xf32, #tpu.memory_space<smem>>
    %66 = vector.broadcast %65 : f32 to vector<1x256xf32>
    %67 = arith.addf %64, %66 : vector<1x256xf32>
    %c3_26 = arith.constant 3 : index
    %c0_27 = arith.constant 0 : index
    %68 = memref.load %arg3[%c3_26, %c0_27] : memref<5x4xf32, #tpu.memory_space<smem>>
    %69 = vector.extract_strided_slice %1 {offsets = [0, 0], sizes = [1, 256], strides = [1, 1]} : vector<4x256xf32> to vector<1x256xf32>
    %70 = vector.broadcast %68 : f32 to vector<1x256xf32>
    %71 = arith.mulf %70, %69 : vector<1x256xf32>
    %c3_28 = arith.constant 3 : index
    %c1_29 = arith.constant 1 : index
    %72 = memref.load %arg3[%c3_28, %c1_29] : memref<5x4xf32, #tpu.memory_space<smem>>
    %73 = vector.extract_strided_slice %1 {offsets = [1, 0], sizes = [1, 256], strides = [1, 1]} : vector<4x256xf32> to vector<1x256xf32>
    %74 = vector.broadcast %72 : f32 to vector<1x256xf32>
    %75 = arith.mulf %74, %73 : vector<1x256xf32>
    %76 = arith.addf %71, %75 : vector<1x256xf32>
    %c3_30 = arith.constant 3 : index
    %c2_31 = arith.constant 2 : index
    %77 = memref.load %arg3[%c3_30, %c2_31] : memref<5x4xf32, #tpu.memory_space<smem>>
    %78 = vector.extract_strided_slice %1 {offsets = [2, 0], sizes = [1, 256], strides = [1, 1]} : vector<4x256xf32> to vector<1x256xf32>
    %79 = vector.broadcast %77 : f32 to vector<1x256xf32>
    %80 = arith.mulf %79, %78 : vector<1x256xf32>
    %81 = arith.addf %76, %80 : vector<1x256xf32>
    %c3_32 = arith.constant 3 : index
    %c3_33 = arith.constant 3 : index
    %82 = memref.load %arg3[%c3_32, %c3_33] : memref<5x4xf32, #tpu.memory_space<smem>>
    %83 = vector.extract_strided_slice %1 {offsets = [3, 0], sizes = [1, 256], strides = [1, 1]} : vector<4x256xf32> to vector<1x256xf32>
    %84 = vector.broadcast %82 : f32 to vector<1x256xf32>
    %85 = arith.mulf %84, %83 : vector<1x256xf32>
    %86 = arith.addf %81, %85 : vector<1x256xf32>
    %c3_34 = arith.constant 3 : index
    %87 = memref.load %arg4[%c3_34] : memref<5xf32, #tpu.memory_space<smem>>
    %88 = vector.broadcast %87 : f32 to vector<1x256xf32>
    %89 = arith.addf %86, %88 : vector<1x256xf32>
    %c4 = arith.constant 4 : index
    %c0_35 = arith.constant 0 : index
    %90 = memref.load %arg3[%c4, %c0_35] : memref<5x4xf32, #tpu.memory_space<smem>>
    %91 = vector.extract_strided_slice %1 {offsets = [0, 0], sizes = [1, 256], strides = [1, 1]} : vector<4x256xf32> to vector<1x256xf32>
    %92 = vector.broadcast %90 : f32 to vector<1x256xf32>
    %93 = arith.mulf %92, %91 : vector<1x256xf32>
    %c4_36 = arith.constant 4 : index
    %c1_37 = arith.constant 1 : index
    %94 = memref.load %arg3[%c4_36, %c1_37] : memref<5x4xf32, #tpu.memory_space<smem>>
    %95 = vector.extract_strided_slice %1 {offsets = [1, 0], sizes = [1, 256], strides = [1, 1]} : vector<4x256xf32> to vector<1x256xf32>
    %96 = vector.broadcast %94 : f32 to vector<1x256xf32>
    %97 = arith.mulf %96, %95 : vector<1x256xf32>
    %98 = arith.addf %93, %97 : vector<1x256xf32>
    %c4_38 = arith.constant 4 : index
    %c2_39 = arith.constant 2 : index
    %99 = memref.load %arg3[%c4_38, %c2_39] : memref<5x4xf32, #tpu.memory_space<smem>>
    %100 = vector.extract_strided_slice %1 {offsets = [2, 0], sizes = [1, 256], strides = [1, 1]} : vector<4x256xf32> to vector<1x256xf32>
    %101 = vector.broadcast %99 : f32 to vector<1x256xf32>
    %102 = arith.mulf %101, %100 : vector<1x256xf32>
    %103 = arith.addf %98, %102 : vector<1x256xf32>
    %c4_40 = arith.constant 4 : index
    %c3_41 = arith.constant 3 : index
    %104 = memref.load %arg3[%c4_40, %c3_41] : memref<5x4xf32, #tpu.memory_space<smem>>
    %105 = vector.extract_strided_slice %1 {offsets = [3, 0], sizes = [1, 256], strides = [1, 1]} : vector<4x256xf32> to vector<1x256xf32>
    %106 = vector.broadcast %104 : f32 to vector<1x256xf32>
    %107 = arith.mulf %106, %105 : vector<1x256xf32>
    %108 = arith.addf %103, %107 : vector<1x256xf32>
    %c4_42 = arith.constant 4 : index
    %109 = memref.load %arg4[%c4_42] : memref<5xf32, #tpu.memory_space<smem>>
    %110 = vector.broadcast %109 : f32 to vector<1x256xf32>
    %111 = arith.addf %108, %110 : vector<1x256xf32>
    %112 = tpu.concatenate %23, %45, %67, %89, %111 in 0 : vector<1x256xf32>, vector<1x256xf32>, vector<1x256xf32>, vector<1x256xf32>, vector<1x256xf32> -> vector<5x256xf32>
    %c0_43 = arith.constant 0 : index
    %c0_44 = arith.constant 0 : index
    %c0_45 = arith.constant 0 : index
    %113 = vector.load %arg5[%c0_43, %c0_44, %c0_45] : memref<1x5x256xf32, #tpu.memory_space<vmem>>, vector<1x5x256xf32>
    %114 = vector.shape_cast %113 : vector<1x5x256xf32> to vector<5x256xf32>
    %115 = vector.shape_cast %112 : vector<5x256xf32> to vector<1x5x256xf32>
    tpu.vector_store %arg5[%c0_43, %c0_44, %c0_45], %115 {strides = array<i32>} : memref<1x5x256xf32, #tpu.memory_space<vmem>>, vector<1x5x256xf32>,
    return
  }
  func.func @transform_0(%arg0: i32, %arg1: i32) -> (i32, i32, i32) {
    %c0_i32 = arith.constant 0 : i32
    %c0_i32_0 = arith.constant 0 : i32
    return %arg0, %c0_i32, %arg1 : i32, i32, i32
  }
  func.func @transform_1(%arg0: i32, %arg1: i32) -> (i32, i32) {
    %c0_i32 = arith.constant 0 : i32
    %c0_i32_0 = arith.constant 0 : i32
    %c0_i32_1 = arith.constant 0 : i32
    return %c0_i32, %c0_i32_0 : i32, i32
  }
  func.func @transform_2(%arg0: i32, %arg1: i32) -> i32 {
    %c0_i32 = arith.constant 0 : i32
    %c0_i32_0 = arith.constant 0 : i32
    return %c0_i32 : i32
  }
  func.func @transform_3(%arg0: i32, %arg1: i32) -> (i32, i32, i32) {
    %c0_i32 = arith.constant 0 : i32
    %c0_i32_0 = arith.constant 0 : i32
    return %arg0, %c0_i32, %arg1 : i32, i32, i32
  }
}

</mosaic_0001>

<llo_original>
// kernel: tpu_custom_call.1
$region0: #{tpu_custom_call.1}
  #allocation0 [shape = 'u32[]', space=smem, size = 0x4, offset = 0x4, fixed_abs, tag = 'smem constant byte address 0x4 - core index']
  #allocation1 [shape = 'u32[144,128]{1,0:T(1,128)}', space=vmem, size = 0x12000, scoped, tag = 'internal scratch']
  %s0 = inlined_call_operand.hbm [shape: f32[2,4,256], index: 0, kind: input, shape index: {}]
  %s1 = inlined_call_operand.vmem [shape: f32[5,4], index: 1, kind: input, shape index: {}]
  %s2 = inlined_call_operand.vmem [shape: f32[5], index: 2, kind: input, shape index: {}]
  %s3 = inlined_call_operand.vmem [shape: f32[2,5,256], index: 3, kind: output, shape index: {}]
  %s4 = sld [smem:[#allocation0]]
  $region57: #{tpu_custom_call.1} parent=0
    _
  %s6 = ssub.s32 1, %s4
  %s7 = scalar_select 0, %s6, %s4
  $region1: #{tpu_custom_call.1} parent=0
    #allocation2 [shape = 'u8[8192]{0}', space=vmem, size = 0x2000, scoped, tag = 'input window, operand 0']
    #allocation3 [shape = 's32[2]{0}', space=sflag, size = 0x8, scoped, tag = 'scoped memory for tpu_custom_call.1']
    #allocation4 [shape = 's32[2]{0}', space=sflag, size = 0x8, scoped, tag = 'scoped memory for tpu_custom_call.1']
    #allocation5 [shape = 'u8[4096]{0}', space=smem, size = 0x1000, scoped, tag = 'input window, operand 1, single buffered']
    #allocation6 [shape = 'u8[512]{0}', space=smem, size = 0x200, scoped, tag = 'input window, operand 2, single buffered']
    #allocation7 [shape = 's32[1]{0}', space=sflag, size = 0x4, scoped, tag = 'scoped memory for tpu_custom_call.1']
    %8 = vsyncpa [#allocation3], 0
    %s9 = scalar_lea.sflag [#allocation3], 1
    %10 = vsyncpa %s9, 0
    %11 = vsyncpa [#allocation4], 0
    %12 = vsyncpa [#allocation7], 0
    loop: start=0, step=1, limit=4
    $region2: #{tpu_custom_call.1} parent=1 // loop_pre_header
      _
    $region3: #{tpu_custom_call.1} parent=1 // loop_header
      %s14 = sphi 0, %s18
      %p15 = scmp.ge.s32.totalorder %s14, 4
      %s21 = sphi 0, %s33
      %s22 = sphi 0, %s29
      %s23 = sphi 0, %s21
      %s24 = sphi 0, %s22
      %s25 = sphi 0, %s23
      %s26 = sphi 0, %s24
      %s38 = sphi 0, %s40
      %s41 = sphi 0, %s38
      %s42 = sphi 0, %s41
      %s58 = sphi 0, %s42
      %s62 = sphi 0, %s62
      %s64 = sphi 0, %s62
      %s65 = sphi 0, %s64
      %s79 = sphi 0, %s65
      %s83 = sphi 0, %s83
      %s85 = sphi 0, %s83
      %s86 = sphi 0, %s85
      %s100 = sphi 0, %s86
      %s108 = sphi 0, %s110
      %s111 = sphi 0, %s108
      %s112 = sphi 0, %s111
      %s128 = sphi 0, %s112
    $region4: #{tpu_custom_call.1} parent=1 // loop_header_branch
      %17 = sbr.rel (%p15) target = $region8
    $region5: #{tpu_custom_call.1} parent=1 // loop_body
      %s19 = ssub.s32 %s14, 1
      %s20 = ssub.s32 %s14, 2
      %s27 = sadd.s32 1, %s22
      %p28 = scmp.ge.s32.totalorder %s27, 1
      %s29 = scalar_select %p28, 0, %s27
      %s30 = sadd.s32 1, %s21
      %s31 = scalar_select %p28, %s30, %s21
      %p32 = scmp.ge.s32.totalorder %s31, 2
      %s33 = scalar_select %p32, 0, %s31
      %s34 = ssub.s32 %s21, %s33
      %s35 = ssub.s32 %s22, %s29
      %s36 = sor.u32 %s34, %s35
      %p37 = scmp.eq.s32.totalorder %s36, 0
      %s39 = sadd.s32 %s38, 1
      %s40 = scalar_select %p37, %s38, %s39
      %p43 = pneg %p37
      %p44 = scmp.eq.s32.totalorder %s14, 1
      %p45 = por %p43, %p44
      %p46 = scmp.ne.s32.totalorder %s38, %s41
      %p47 = scmp.eq.s32.totalorder %s14, 0
      %p48 = por %p46, %p47
      %p49 = scmp.ne.s32.totalorder %s38, %s41
      %p50 = scmp.eq.s32.totalorder %s19, 1
      %p51 = por %p49, %p50
      %p52 = scmp.ne.s32.totalorder %s41, %s42
      %p53 = scmp.eq.s32.totalorder %s19, 0
      %p54 = por %p52, %p53
      %p55 = scmp.ne.s32.totalorder %s41, %s42
      %p56 = scmp.eq.s32.totalorder %s20, 1
      %p57 = por %p55, %p56
      %p59 = scmp.ne.s32.totalorder %s42, %s58
      %p60 = scmp.eq.s32.totalorder %s20, 0
      %p61 = por %p59, %p60
      %s63 = sadd.s32 %s62, 1
      %p66 = scmp.eq.s32.totalorder %s14, 1
      %p67 = scmp.ne.s32.totalorder %s62, %s64
      %p68 = scmp.eq.s32.totalorder %s14, 0
      %p69 = por %p67, %p68
      %p70 = scmp.ne.s32.totalorder %s62, %s64
      %p71 = scmp.eq.s32.totalorder %s19, 1
      %p72 = por %p70, %p71
      %p73 = scmp.ne.s32.totalorder %s64, %s65
      %p74 = scmp.eq.s32.totalorder %s19, 0
      %p75 = por %p73, %p74
      %p76 = scmp.ne.s32.totalorder %s64, %s65
      %p77 = scmp.eq.s32.totalorder %s20, 1
      %p78 = por %p76, %p77
      %p80 = scmp.ne.s32.totalorder %s65, %s79
      %p81 = scmp.eq.s32.totalorder %s20, 0
      %p82 = por %p80, %p81
      %s84 = sadd.s32 %s83, 1
      %p87 = scmp.eq.s32.totalorder %s14, 1
      %p88 = scmp.ne.s32.totalorder %s83, %s85
      %p89 = scmp.eq.s32.totalorder %s14, 0
      %p90 = por %p88, %p89
      %p91 = scmp.ne.s32.totalorder %s83, %s85
      %p92 = scmp.eq.s32.totalorder %s19, 1
      %p93 = por %p91, %p92
      %p94 = scmp.ne.s32.totalorder %s85, %s86
      %p95 = scmp.eq.s32.totalorder %s19, 0
      %p96 = por %p94, %p95
      %p97 = scmp.ne.s32.totalorder %s85, %s86
      %p98 = scmp.eq.s32.totalorder %s20, 1
      %p99 = por %p97, %p98
      %p101 = scmp.ne.s32.totalorder %s86, %s100
      %p102 = scmp.eq.s32.totalorder %s20, 0
      %p103 = por %p101, %p102
      %s104 = ssub.s32 %s21, %s33
      %s105 = ssub.s32 %s22, %s29
      %s106 = sor.u32 %s104, %s105
      %p107 = scmp.eq.s32.totalorder %s106, 0
      %s109 = sadd.s32 %s108, 1
      %s110 = scalar_select %p107, %s108, %s109
      %p113 = pneg %p107
      %p114 = scmp.eq.s32.totalorder %s14, 1
      %p115 = por %p113, %p114
      %p116 = scmp.ne.s32.totalorder %s108, %s111
      %p117 = scmp.eq.s32.totalorder %s14, 0
      %p118 = por %p116, %p117
      %p119 = scmp.ne.s32.totalorder %s108, %s111
      %p120 = scmp.eq.s32.totalorder %s19, 1
      %p121 = por %p119, %p120
      %p122 = scmp.ne.s32.totalorder %s111, %s112
      %p123 = scmp.eq.s32.totalorder %s19, 0
      %p124 = por %p122, %p123
      %p125 = scmp.ne.s32.totalorder %s111, %s112
      %p126 = scmp.eq.s32.totalorder %s20, 1
      %p127 = por %p125, %p126
      %p129 = scmp.ne.s32.totalorder %s112, %s128
      %p130 = scmp.eq.s32.totalorder %s20, 0
      %p131 = por %p129, %p130
      %p132 = scmp.le.s32.totalorder 1, %s14
      %p133 = scmp.lt.s32.totalorder %s14, 3
      %p134 = pnand %p132, %p133
      %p135 = pneg %p134
      // Predicated region
      $region9: #{tpu_custom_call.1} parent=5 // pred_check
        _
      $region10: #{tpu_custom_call.1} parent=5 // pred_check_branch
        %137 = sbr.rel (%p134) target = $region12
      $region11: #{tpu_custom_call.1} parent=5 // pred_region
        %s138 = ssub.s32 %s14, 1
        // Predicated region
        $region13: #{tpu_custom_call.1} parent=11 // pred_check
          %p139 = pneg %p75
        $region14: #{tpu_custom_call.1} parent=11 // pred_check_branch
          %141 = sbr.rel (%p139) target = $region16
        $region15: #{tpu_custom_call.1} parent=11 // pred_region
          %s143 = ssub.s32 128, 128
          %144 = vsyncadd [#allocation4], %s143
          %s146 = sshll.u32 %s1, 4
          %s147 = int_to_ptr.vmem [resolvable:$true] %s146
          %149 = dma.vmem_to_smem %s147, 128, [#allocation5], [#allocation4]
        $region16: #{tpu_custom_call.1} parent=11 // pred_fallthru
          _
        // Predicated region
        $region17: #{tpu_custom_call.1} parent=11 // pred_check
          %p150 = pneg %p96
        $region18: #{tpu_custom_call.1} parent=11 // pred_check_branch
          %152 = sbr.rel (%p150) target = $region20
        $region19: #{tpu_custom_call.1} parent=11 // pred_region
          %s154 = ssub.s32 16, 16
          %155 = vsyncadd [#allocation7], %s154
          %s157 = sshll.u32 %s2, 4
          %s158 = int_to_ptr.vmem [resolvable:$true] %s157
          %160 = dma.vmem_to_smem %s158, 16, [#allocation6], [#allocation7]
        $region20: #{tpu_custom_call.1} parent=11 // pred_fallthru
          _
      $region12: #{tpu_custom_call.1} parent=5 // pred_fallthru
        _
      %p161 = scmp.lt.s32.totalorder %s14, 2
      // Predicated region
      $region21: #{tpu_custom_call.1} parent=5 // pred_check
        %p162 = pneg %p161
      $region22: #{tpu_custom_call.1} parent=5 // pred_check_branch
        %164 = sbr.rel (%p162) target = $region24
      $region23: #{tpu_custom_call.1} parent=5 // pred_region
        // Predicated region
        $region25: #{tpu_custom_call.1} parent=23 // pred_check
          %p165 = pneg %p48
        $region26: #{tpu_custom_call.1} parent=23 // pred_check_branch
          %167 = sbr.rel (%p165) target = $region28
        $region27: #{tpu_custom_call.1} parent=23 // pred_region
          %s168 = sand.u32 %s38, 1
          %s169 = scalar_lea.sflag [#allocation3], %s168
          %s170 = sand.u32 %s38, 1
          %s171 = smul.addr %s170, 8
          %s172 = scalar_lea.vmem [#allocation2], %s171
          %s173 = smul.u32 2, %s22
          %s175 = ssub.s32 128, 128
          %176 = vsyncadd %s169, %s175
          %s177 = smul.addr %s21, 2
          %s178 = sadd.s32 %s173, %s177
          %s179 = smul.addr %s178, 64
          %s180 = scalar_lea.hbm %s0, %s179
          %s182 = sshll.u32 %s172, 4
          %s183 = int_to_ptr.vmem [resolvable:$true] %s182
          %185 = dma.hbm_to_vmem [thread:$0]  %s180, 128, %s183, %s169
        $region28: #{tpu_custom_call.1} parent=23 // pred_fallthru
          _
      $region24: #{tpu_custom_call.1} parent=5 // pred_fallthru
        _
      %p186 = scmp.le.s32.totalorder 1, %s14
      %p187 = scmp.lt.s32.totalorder %s14, 3
      %p188 = pnand %p186, %p187
      %p189 = pneg %p188
      // Predicated region
      $region29: #{tpu_custom_call.1} parent=5 // pred_check
        _
      $region30: #{tpu_custom_call.1} parent=5 // pred_check_branch
        %191 = sbr.rel (%p188) target = $region32
      $region31: #{tpu_custom_call.1} parent=5 // pred_region
        %s192 = ssub.s32 %s14, 1
        %s193 = sand.u32 %s41, 1
        %s194 = scalar_lea.sflag [#allocation3], %s193
        %s195 = sand.u32 %s41, 1
        %s196 = smul.addr %s195, 8
        %s197 = scalar_lea.vmem [#allocation2], %s196
        // Predicated region
        $region33: #{tpu_custom_call.1} parent=31 // pred_check
          %p198 = pneg %p54
        $region34: #{tpu_custom_call.1} parent=31 // pred_check_branch
          %200 = sbr.rel (%p198) target = $region36
        $region35: #{tpu_custom_call.1} parent=31 // pred_region
          %201 = dma.done %s194, 128
        $region36: #{tpu_custom_call.1} parent=31 // pred_fallthru
          _
        // Predicated region
        $region37: #{tpu_custom_call.1} parent=31 // pred_check
          %p202 = pneg %p75
        $region38: #{tpu_custom_call.1} parent=31 // pred_check_branch
          %204 = sbr.rel (%p202) target = $region40
        $region39: #{tpu_custom_call.1} parent=31 // pred_region
          %205 = dma.done [#allocation4], 128
        $region40: #{tpu_custom_call.1} parent=31 // pred_fallthru
          _
        // Predicated region
        $region41: #{tpu_custom_call.1} parent=31 // pred_check
          %p206 = pneg %p96
        $region42: #{tpu_custom_call.1} parent=31 // pred_check_branch
          %208 = sbr.rel (%p206) target = $region44
        $region43: #{tpu_custom_call.1} parent=31 // pred_region
          %209 = dma.done [#allocation7], 16
        $region44: #{tpu_custom_call.1} parent=31 // pred_fallthru
          _
        %210 = sfence
        %s211 = sand.u32 %s41, 1
        %s212 = scalar_lea.sflag [#allocation3], %s211
        %s213 = sand.u32 %s41, 1
        %s214 = smul.addr %s213, 8
        %s215 = scalar_lea.vmem [#allocation2], %s214
        %p216 = pneg %p54
        %p217 = pneg %p51
        %p218 = pneg %p75
        %p219 = pneg %p72
        %p220 = pneg %p96
        %p221 = pneg %p93
        %p222 = pneg %p124
        %p223 = pneg %p121
        %s224 = smul.u32 2, %s24
        %p225 = scmp.lt.s32.totalorder %s23, 1
        %s226 = scalar_select %p225, %s23, 1
        %p227 = scmp.lt.s32.totalorder %s224, 1
        %s228 = scalar_select %p227, %s224, 1
        %s229 = smul.addr %s226, 2
        %s230 = sadd.s32 %s228, %s229
        %s231 = smul.addr %s230, 8
        %s232 = scalar_lea.vmem %s3, %s231
        %s233 = smul.u32 2, %s24
        %s234 = smul.u32 2, %s24
        %p235 = scmp.lt.s32.totalorder %s23, 1
        %s236 = scalar_select %p235, %s23, 1
        %p237 = scmp.lt.s32.totalorder %s234, 1
        %s238 = scalar_select %p237, %s234, 1
        %s239 = smul.addr %s236, 2
        %s240 = sadd.s32 %s238, %s239
        %s241 = smul.addr %s240, 8
        %s242 = scalar_lea.vmem %s3, %s241
        %s243 = smul.u32 2, %s24
        %v244 = vld [vmem:[%s197] sm:$0xff]
        %s245 = sld [smem:[#allocation5]]
        %v246 = vstv %s245
        %v247 = vmul.f32 %v246, %v244
        %s248 = sld [smem:[#allocation5 + $0x1]]
        %v249 = vstv %s248
        %v250 = vmul.f32 %v249, %v244
        %v252 = vrot.slane %v250, 5
        %v253 = vrot.slane %v252, 4
        %v255 = vadd.f32 %v247, %v253
        %s256 = sld [smem:[#allocation5 + $0x2]]
        %v257 = vstv %s256
        %v258 = vmul.f32 %v257, %v244
        %v260 = vrot.slane %v258, 6
        %v261 = vrot.slane %v260, 4
        %v263 = vadd.f32 %v255, %v261
        %s264 = sld [smem:[#allocation5 + $0x3]]
        %v265 = vstv %s264
        %v266 = vmul.f32 %v265, %v244
        %v268 = vrot.slane %v266, 7
        %v269 = vrot.slane %v268, 4
        %v271 = vadd.f32 %v263, %v269
        %s272 = sld [smem:[#allocation6]]
        %v273 = vstv %s272
        %v274 = vadd.f32 %v271, %v273
        %s275 = sld [smem:[#allocation5 + $0x80]]
        %v276 = vstv %s275
        %v277 = vmul.f32 %v276, %v244
        %s278 = sld [smem:[#allocation5 + $0x81]]
        %v279 = vstv %s278
        %v280 = vmul.f32 %v279, %v244
        %v282 = vrot.slane %v280, 5
        %v283 = vrot.slane %v282, 4
        %v285 = vadd.f32 %v277, %v283
        %s286 = sld [smem:[#allocation5 + $0x82]]
        %v287 = vstv %s286
        %v288 = vmul.f32 %v287, %v244
        %v290 = vrot.slane %v288, 6
        %v291 = vrot.slane %v290, 4
        %v293 = vadd.f32 %v285, %v291
        %s294 = sld [smem:[#allocation5 + $0x83]]
        %v295 = vstv %s294
        %v296 = vmul.f32 %v295, %v244
        %v298 = vrot.slane %v296, 7
        %v299 = vrot.slane %v298, 4
        %v301 = vadd.f32 %v293, %v299
        %s302 = sld [smem:[#allocation6 + $0x1]]
        %v303 = vstv %s302
        %v304 = vadd.f32 %v301, %v303
        %s305 = sld [smem:[#allocation5 + $0x100]]
        %v306 = vstv %s305
        %v307 = vmul.f32 %v306, %v244
        %s308 = sld [smem:[#allocation5 + $0x101]]
        %v309 = vstv %s308
        %v310 = vmul.f32 %v309, %v244
        %v312 = vrot.slane %v310, 5
        %v313 = vrot.slane %v312, 4
        %v315 = vadd.f32 %v307, %v313
        %s316 = sld [smem:[#allocation5 + $0x102]]
        %v317 = vstv %s316
        %v318 = vmul.f32 %v317, %v244
        %v320 = vrot.slane %v318, 6
        %v321 = vrot.slane %v320, 4
        %v323 = vadd.f32 %v315, %v321
        %s324 = sld [smem:[#allocation5 + $0x103]]
        %v325 = vstv %s324
        %v326 = vmul.f32 %v325, %v244
        %v328 = vrot.slane %v326, 7
        %v329 = vrot.slane %v328, 4
        %v331 = vadd.f32 %v323, %v329
        %s332 = sld [smem:[#allocation6 + $0x2]]
        %v333 = vstv %s332
        %v334 = vadd.f32 %v331, %v333
        %s335 = sld [smem:[#allocation5 + $0x180]]
        %v336 = vstv %s335
        %v337 = vmul.f32 %v336, %v244
        %s338 = sld [smem:[#allocation5 + $0x181]]
        %v339 = vstv %s338
        %v340 = vmul.f32 %v339, %v244
        %v342 = vrot.slane %v340, 5
        %v343 = vrot.slane %v342, 4
        %v345 = vadd.f32 %v337, %v343
        %s346 = sld [smem:[#allocation5 + $0x182]]
        %v347 = vstv %s346
        %v348 = vmul.f32 %v347, %v244
        %v350 = vrot.slane %v348, 6
        %v351 = vrot.slane %v350, 4
        %v353 = vadd.f32 %v345, %v351
        %s354 = sld [smem:[#allocation5 + $0x183]]
        %v355 = vstv %s354
        %v356 = vmul.f32 %v355, %v244
        %v358 = vrot.slane %v356, 7
        %v359 = vrot.slane %v358, 4
        %v361 = vadd.f32 %v353, %v359
        %s362 = sld [smem:[#allocation6 + $0x3]]
        %v363 = vstv %s362
        %v364 = vadd.f32 %v361, %v363
        %s365 = sld [smem:[#allocation5 + $0x200]]
        %v366 = vstv %s365
        %v367 = vmul.f32 %v366, %v244
        %s368 = sld [smem:[#allocation5 + $0x201]]
        %v369 = vstv %s368
        %v370 = vmul.f32 %v369, %v244
        %v372 = vrot.slane %v370, 5
        %v373 = vrot.slane %v372, 4
        %v375 = vadd.f32 %v367, %v373
        %s376 = sld [smem:[#allocation5 + $0x202]]
        %v377 = vstv %s376
        %v378 = vmul.f32 %v377, %v244
        %v380 = vrot.slane %v378, 6
        %v381 = vrot.slane %v380, 4
        %v383 = vadd.f32 %v375, %v381
        %s384 = sld [smem:[#allocation5 + $0x203]]
        %v385 = vstv %s384
        %v386 = vmul.f32 %v385, %v244
        %v388 = vrot.slane %v386, 7
        %v389 = vrot.slane %v388, 4
        %v391 = vadd.f32 %v383, %v389
        %s392 = sld [smem:[#allocation6 + $0x4]]
        %v393 = vstv %s392
        %v394 = vadd.f32 %v391, %v393
        %v396 = vlaneseq
        %v397 = vshrl.u32 %v396, 7
        %v398 = vsub.s32 0, %v397
        %v399 = vrot.slane %v274, %v398
        %v400 = vlaneseq
        %v401 = vshrl.u32 %v400, 7
        %v402 = vsub.s32 4, %v401
        %v403 = vrot.slane %v274, %v402
        %v407 = vlaneseq
        %v408 = vshrl.u32 %v407, 7
        %v409 = vsub.s32 0, %v408
        %v410 = vrot.slane %v304, %v409
        %v411 = vlaneseq
        %v412 = vshrl.u32 %v411, 7
        %v413 = vsub.s32 4, %v412
        %v414 = vrot.slane %v304, %v413
        %v418 = vlaneseq
        %v419 = vshrl.u32 %v418, 7
        %v420 = vsub.s32 0, %v419
        %v421 = vrot.slane %v334, %v420
        %v422 = vlaneseq
        %v423 = vshrl.u32 %v422, 7
        %v424 = vsub.s32 4, %v423
        %v425 = vrot.slane %v334, %v424
        %v429 = vlaneseq
        %v430 = vshrl.u32 %v429, 7
        %v431 = vsub.s32 0, %v430
        %v432 = vrot.slane %v364, %v431
        %v433 = vlaneseq
        %v434 = vshrl.u32 %v433, 7
        %v435 = vsub.s32 4, %v434
        %v436 = vrot.slane %v364, %v435
        %v440 = vlaneseq
        %v441 = vshrl.u32 %v440, 7
        %v442 = vsub.s32 0, %v441
        %v443 = vrot.slane %v394, %v442
        %v444 = vlaneseq
        %v445 = vshrl.u32 %v444, 7
        %v446 = vsub.s32 4, %v445
        %v447 = vrot.slane %v394, %v446
        %vm450 = vcmask 1040384
        %v451 = vsel %vm450, %v399, %v410
        %v452 = vsel %vm450, %v403, %v414
        %vm453 = vcmask 1041408
        %v454 = vsel %vm453, %v451, %v421
        %v455 = vsel %vm453, %v452, %v425
        %vm456 = vcmask 1042432
        %v457 = vsel %vm456, %v454, %v432
        %v458 = vsel %vm456, %v455, %v436
        %vm459 = vcmask 1043456
        %v460 = vsel %vm459, %v457, %v443
        %v461 = vsel %vm459, %v458, %v447
        %462 = vst [vmem:[%s242] sm:$0x1f] %v460
        %463 = vst [vmem:[%s242 + $0x8] sm:$0x1f] %v461
        %s464 = smul.u32 2, %s24
        %p465 = scmp.lt.s32.totalorder %s23, 1
        %s466 = scalar_select %p465, %s23, 1
        %p467 = scmp.lt.s32.totalorder %s464, 1
        %s468 = scalar_select %p467, %s464, 1
        %s469 = smul.addr %s466, 2
        %s470 = sadd.s32 %s468, %s469
        %s471 = smul.addr %s470, 8
        %s472 = scalar_lea.vmem %s3, %s471
        // Predicated region
        $region45: #{tpu_custom_call.1} parent=31 // pred_check
          %p473 = pneg %p121
        $region46: #{tpu_custom_call.1} parent=31 // pred_check_branch
          %475 = sbr.rel (%p473) target = $region48
        $region47: #{tpu_custom_call.1} parent=31 // pred_region
          %s476 = smul.u32 2, %s24
        $region48: #{tpu_custom_call.1} parent=31 // pred_fallthru
          _
      $region32: #{tpu_custom_call.1} parent=5 // pred_fallthru
        _
      %p477 = scmp.le.s32.totalorder 2, %s14
      // Predicated region
      $region49: #{tpu_custom_call.1} parent=5 // pred_check
        %p478 = pneg %p477
      $region50: #{tpu_custom_call.1} parent=5 // pred_check_branch
        %480 = sbr.rel (%p478) target = $region52
      $region51: #{tpu_custom_call.1} parent=5 // pred_region
        %s481 = ssub.s32 %s14, 2
        // Predicated region
        $region53: #{tpu_custom_call.1} parent=51 // pred_check
          %p482 = pneg %p127
        $region54: #{tpu_custom_call.1} parent=51 // pred_check_branch
          %484 = sbr.rel (%p482) target = $region56
        $region55: #{tpu_custom_call.1} parent=51 // pred_region
          %s485 = smul.u32 2, %s26
          %p486 = scmp.lt.s32.totalorder %s25, 1
          %s487 = scalar_select %p486, %s25, 1
          %p488 = scmp.lt.s32.totalorder %s485, 1
          %s489 = scalar_select %p488, %s485, 1
          %s490 = smul.addr %s487, 2
          %s491 = sadd.s32 %s489, %s490
          %s492 = smul.addr %s491, 8
          %s493 = scalar_lea.vmem %s3, %s492
        $region56: #{tpu_custom_call.1} parent=51 // pred_fallthru
          _
      $region52: #{tpu_custom_call.1} parent=5 // pred_fallthru
        _
    $region6: #{tpu_custom_call.1} parent=1 // loop_footer
      %s18 = sadd.s32 1, %s14
    $region7: #{tpu_custom_call.1} parent=1 // loop_footer_branch
      %13 = sbr.rel target = $region3
    $region8: #{tpu_custom_call.1} parent=1 // loop_exit
      _
    %494 = vsyncpa [#allocation3], 1
    %s495 = scalar_lea.sflag [#allocation3], 1
    %496 = vsyncpa %s495, 1
    %497 = vsyncpa [#allocation4], 1
    %s498 = scalar_lea.sflag [#allocation4], 1
    %499 = vsyncpa %s498, 1
    %500 = vsyncpa [#allocation7], 1

</llo_original>
